<compile_context>
chip_gen: v7x
topology: tpu7x:2x2x1
jax: 0.10.0
libtpu: 0.0.40
codegen_flags: <defaults>
</compile_context>

<pallas_src>
import functools

import numpy as np
import jax
import jax.numpy as jnp
from jax.experimental import pallas as pl
from jax.experimental.pallas import tpu as pltpu

LATENT_DIM = 2            # forced by X_latent.view(B, -1, 2)
HIDDEN = 32               # synthetic decoder hidden width
OBS_DIM = 32              # observation feature width
AUX_COEFF = 0.5
FORWARD_STEPS = (1, 2, 3)


def _fused_loss_kernel(lat_aux_ref, tgt_aux_ref, lat_pred_ref, tgt_pred_ref,
                       w1_ref, b1_ref, w2_ref, b2_ref, out_ref,
                       *, w_aux, w_pred):
    """Fused decoder-MLP on both latent streams + weighted-MSE combine.

    decode(z) = relu(z @ w1 + b1) @ w2 + b2  (pure per-row MLP, so batching
    every time step into one (N, 2) block is exactly the per-step loop of the
    reference `forward(model, X)`).

    out[0,0] = w_pred * SSE(decode(lat_pred), tgt_pred)
             + w_aux  * SSE(decode(lat_aux),  tgt_aux)
    with w_pred = 1/tgt_pred.size and w_aux = aux_coeff/tgt_aux.size baked in.
    """
    w1 = w1_ref[...]          # (2, H)   — loaded once, shared by both streams
    b1 = b1_ref[...]          # (1, H)
    w2 = w2_ref[...]          # (H, D)
    b2 = b2_ref[...]          # (1, D)

    def decode_sse(lat, tgt):
        # K=2 contraction as two broadcast FMAs on the VPU (skip the MXU for a
        # degenerate matmul); keep the (N,H)@(H,D) contraction on the MXU.
        h = lat[:, 0:1] * w1[0:1, :] + lat[:, 1:2] * w1[1:2, :] + b1
        h = jnp.maximum(h, 0.0)                                   # ReLU
        y = jnp.dot(h, w2, preferred_element_type=jnp.float32) + b2
        d = y - tgt
        return jnp.sum(d * d)

    sse_aux = decode_sse(lat_aux_ref[...], tgt_aux_ref[...])
    sse_pred = decode_sse(lat_pred_ref[...], tgt_pred_ref[...])
    out_ref[0, 0] = w_pred * sse_pred + w_aux * sse_aux


def fused_autoencoder_loss(lat_aux, tgt_aux, lat_pred, tgt_pred, params):
    """Single fused kernel producing the final combined scalar loss."""
    w1, b1, w2, b2 = params

    n_total = lat_aux.shape[0] + lat_pred.shape[0]
    flops = 2 * n_total * (LATENT_DIM * HIDDEN + HIDDEN * OBS_DIM) \
        + 4 * n_total * (HIDDEN + OBS_DIM)
    bytes_accessed = 4 * (lat_aux.size + tgt_aux.size + lat_pred.size
                          + tgt_pred.size + w1.size + b1.size + w2.size
                          + b2.size + 1)

    kernel = functools.partial(
        _fused_loss_kernel,
        w_aux=float(AUX_COEFF) / float(tgt_aux.size),   # static -> baked in
        w_pred=1.0 / float(tgt_pred.size),
    )

    vmem = pl.BlockSpec(memory_space=pltpu.MemorySpace.VMEM)
    out = pl.pallas_call(
        kernel,
        out_shape=jax.ShapeDtypeStruct((1, 1), jnp.float32),
        in_specs=[vmem] * 8,
        out_specs=pl.BlockSpec(memory_space=pltpu.MemorySpace.SMEM),
        cost_estimate=pl.CostEstimate(flops=flops, transcendentals=0,
                                      bytes_accessed=bytes_accessed),
    )(lat_aux, tgt_aux, lat_pred, tgt_pred, w1, b1, w2, b2)
    return out[0, 0]


@jax.jit
def loss_with_autoencoder(X_latent, y_latent_pred, X_train_obs, y_train_obs, params):
    B = X_latent.shape[0]

    # X_latent = X_latent.view(B, -1, 2)
    X_lat = X_latent.reshape(B, -1, LATENT_DIM)

    # y_train_obs[:, forward_steps - 1]: FORWARD_STEPS is static, so use a
    # zero-cost contiguous slice when possible instead of an XLA gather.
    fs_idx = np.asarray(FORWARD_STEPS, dtype=np.int64) - 1
    if np.array_equal(fs_idx, np.arange(fs_idx[0], fs_idx[0] + fs_idx.size)):
        y_obs_sel = jax.lax.slice_in_dim(
            y_train_obs, int(fs_idx[0]), int(fs_idx[-1]) + 1, axis=1)
    else:  # non-contiguous forward_steps: fall back to a gather
        y_obs_sel = y_train_obs[:, jnp.asarray(fs_idx, dtype=jnp.int32)]

    # Flatten (B, T, F) -> (B*T, F); per-time-step decode == batched decode
    # because the decoder is a pure per-sample MLP.
    lat_aux = X_lat.reshape(-1, LATENT_DIM)
    tgt_aux = X_train_obs.reshape(-1, OBS_DIM)
    lat_pred = y_latent_pred.reshape(-1, LATENT_DIM)
    tgt_pred = y_obs_sel.reshape(-1, OBS_DIM)

    return fused_autoencoder_loss(lat_aux, tgt_aux, lat_pred, tgt_pred, params)


def _reference_loss(X_latent, y_latent_pred, X_train_obs, y_train_obs, params):
    """Pure-JAX reference mirroring the PyTorch module (MSE criterion)."""
    w1, b1, w2, b2 = params

    def decode(z):
        h = jnp.maximum(z @ w1 + b1, 0.0)
        return h @ w2 + b2

    B = X_latent.shape[0]
    X_lat = X_latent.reshape(B, -1, LATENT_DIM)
    recons = decode(X_lat.reshape(-1, LATENT_DIM)).reshape(B, -1, OBS_DIM)
    pred_recons = decode(y_latent_pred.reshape(-1, LATENT_DIM)).reshape(
        B, -1, OBS_DIM)
    fs_idx = jnp.asarray(np.asarray(FORWARD_STEPS) - 1, dtype=jnp.int32)
    loss_aux = jnp.mean((recons - X_train_obs) ** 2)
    loss_pred = jnp.mean((pred_recons - y_train_obs[:, fs_idx]) ** 2)
    return loss_pred + AUX_COEFF * loss_aux


if __name__ == "__main__":
    key = jax.random.PRNGKey(0)
    ks = jax.random.split(key, 8)

    B, T = 2, 8                       # batch, number of latent time steps
    n_fs = len(FORWARD_STEPS)
    T_y = 4                           # y_train_obs has >= max(FORWARD_STEPS) steps

    # Inputs (deterministic).
    X_latent = jax.random.normal(ks[0], (B, T * LATENT_DIM), jnp.float32)
    y_latent_pred = jax.random.normal(ks[1], (B, n_fs, LATENT_DIM), jnp.float32)
    X_train_obs = jax.random.normal(ks[2], (B, T, OBS_DIM), jnp.float32)
    y_train_obs = jax.random.normal(ks[3], (B, T_y, OBS_DIM), jnp.float32)

    # Synthetic decoder parameters (autoencoder.decode): Linear(2,H)-ReLU-Linear(H,D).
    w1 = jax.random.normal(ks[4], (LATENT_DIM, HIDDEN), jnp.float32) * 0.1
    b1 = jax.random.normal(ks[5], (1, HIDDEN), jnp.float32) * 0.1
    w2 = jax.random.normal(ks[6], (HIDDEN, OBS_DIM), jnp.float32) * 0.1
    b2 = jax.random.normal(ks[7], (1, OBS_DIM), jnp.float32) * 0.1
    params = (w1, b1, w2, b2)

    loss = loss_with_autoencoder(X_latent, y_latent_pred, X_train_obs,
                                 y_train_obs, params)
    jax.block_until_ready(loss)

    ref = _reference_loss(X_latent, y_latent_pred, X_train_obs, y_train_obs,
                          params)
    np.testing.assert_allclose(np.asarray(loss), np.asarray(ref),
                               rtol=2e-3, atol=1e-5)
    print("KERNEL_OK")
</pallas_src>

<mosaic_0001>
module attributes {stable_mosaic.version = 11 : i64} {
  func.func @_fused_loss_kernel(%arg0: memref<16x2xf32, #tpu.memory_space<vmem>>, %arg1: memref<16x32xf32, #tpu.memory_space<vmem>>, %arg2: memref<6x2xf32, #tpu.memory_space<vmem>>, %arg3: memref<6x32xf32, #tpu.memory_space<vmem>>, %arg4: memref<2x32xf32, #tpu.memory_space<vmem>>, %arg5: memref<1x32xf32, #tpu.memory_space<vmem>>, %arg6: memref<32x32xf32, #tpu.memory_space<vmem>>, %arg7: memref<1x32xf32, #tpu.memory_space<vmem>>, %arg8: memref<1x1xf32, #tpu.memory_space<smem>>) attributes {dimension_semantics = [], scalar_prefetch = 0 : i64, scratch_operands = 0 : i64, tpu.core_type = #tpu.core_type<tc>} {
    %c0 = arith.constant 0 : index
    %c0_0 = arith.constant 0 : index
    %0 = vector.load %arg4[%c0, %c0_0] : memref<2x32xf32, #tpu.memory_space<vmem>>, vector<2x32xf32>
    %c0_1 = arith.constant 0 : index
    %c0_2 = arith.constant 0 : index
    %1 = vector.load %arg5[%c0_1, %c0_2] : memref<1x32xf32, #tpu.memory_space<vmem>>, vector<1x32xf32>
    %c0_3 = arith.constant 0 : index
    %c0_4 = arith.constant 0 : index
    %2 = vector.load %arg6[%c0_3, %c0_4] : memref<32x32xf32, #tpu.memory_space<vmem>>, vector<32x32xf32>
    %c0_5 = arith.constant 0 : index
    %c0_6 = arith.constant 0 : index
    %3 = vector.load %arg7[%c0_5, %c0_6] : memref<1x32xf32, #tpu.memory_space<vmem>>, vector<1x32xf32>
    %c0_7 = arith.constant 0 : index
    %c0_8 = arith.constant 0 : index
    %4 = vector.load %arg0[%c0_7, %c0_8] : memref<16x2xf32, #tpu.memory_space<vmem>>, vector<16x2xf32>
    %c0_9 = arith.constant 0 : index
    %c0_10 = arith.constant 0 : index
    %5 = vector.load %arg1[%c0_9, %c0_10] : memref<16x32xf32, #tpu.memory_space<vmem>>, vector<16x32xf32>
    %6 = vector.extract_strided_slice %4 {offsets = [0, 0], sizes = [16, 1], strides = [1, 1]} : vector<16x2xf32> to vector<16x1xf32>
    %7 = vector.extract_strided_slice %0 {offsets = [0, 0], sizes = [1, 32], strides = [1, 1]} : vector<2x32xf32> to vector<1x32xf32>
    %8 = vector.broadcast %6 : vector<16x1xf32> to vector<16x32xf32>
    %9 = vector.broadcast %7 : vector<1x32xf32> to vector<16x32xf32>
    %10 = arith.mulf %8, %9 : vector<16x32xf32>
    %11 = vector.extract_strided_slice %4 {offsets = [0, 1], sizes = [16, 1], strides = [1, 1]} : vector<16x2xf32> to vector<16x1xf32>
    %12 = vector.extract_strided_slice %0 {offsets = [1, 0], sizes = [1, 32], strides = [1, 1]} : vector<2x32xf32> to vector<1x32xf32>
    %13 = vector.broadcast %11 : vector<16x1xf32> to vector<16x32xf32>
    %14 = vector.broadcast %12 : vector<1x32xf32> to vector<16x32xf32>
    %15 = arith.mulf %13, %14 : vector<16x32xf32>
    %16 = arith.addf %10, %15 : vector<16x32xf32>
    %17 = vector.broadcast %1 : vector<1x32xf32> to vector<16x32xf32>
    %18 = arith.addf %16, %17 : vector<16x32xf32>
    %cst = arith.constant 0.000000e+00 : f32
    %19 = vector.broadcast %cst : f32 to vector<16x32xf32>
    %20 = arith.maximumf %18, %19 : vector<16x32xf32>
    %cst_11 = arith.constant dense<0.000000e+00> : vector<16x32xf32>
    %21 = tpu.matmul %20, %2, %cst_11 {dimension_numbers = #tpu.dot_dimension_numbers<[1], [0], [0], [1], [0, 0, 1, 1], [], []>} : vector<16x32xf32>, vector<32x32xf32>, vector<16x32xf32> -> vector<16x32xf32>
    %22 = vector.broadcast %3 : vector<1x32xf32> to vector<16x32xf32>
    %23 = arith.addf %21, %22 : vector<16x32xf32>
    %24 = arith.subf %23, %5 : vector<16x32xf32>
    %25 = arith.mulf %24, %24 : vector<16x32xf32>
    %26 = vector.shape_cast %25 : vector<16x32xf32> to vector<1x16x32xf32>
    %cst_12 = arith.constant dense<0.000000e+00> : vector<1xf32>
    %27 = vector.multi_reduction <add>, %26, %cst_12 [1, 2] : vector<1x16x32xf32> to vector<1xf32>
    %28 = vector.shape_cast %27 : vector<1xf32> to vector<1x1x1xf32>
    %29 = vector.extract %28[0, 0, 0] : f32 from vector<1x1x1xf32>
    %c0_13 = arith.constant 0 : index
    %c0_14 = arith.constant 0 : index
    %30 = vector.load %arg2[%c0_13, %c0_14] : memref<6x2xf32, #tpu.memory_space<vmem>>, vector<6x2xf32>
    %c0_15 = arith.constant 0 : index
    %c0_16 = arith.constant 0 : index
    %31 = vector.load %arg3[%c0_15, %c0_16] : memref<6x32xf32, #tpu.memory_space<vmem>>, vector<6x32xf32>
    %32 = vector.extract_strided_slice %30 {offsets = [0, 0], sizes = [6, 1], strides = [1, 1]} : vector<6x2xf32> to vector<6x1xf32>
    %33 = vector.extract_strided_slice %0 {offsets = [0, 0], sizes = [1, 32], strides = [1, 1]} : vector<2x32xf32> to vector<1x32xf32>
    %34 = vector.broadcast %32 : vector<6x1xf32> to vector<6x32xf32>
    %35 = vector.broadcast %33 : vector<1x32xf32> to vector<6x32xf32>
    %36 = arith.mulf %34, %35 : vector<6x32xf32>
    %37 = vector.extract_strided_slice %30 {offsets = [0, 1], sizes = [6, 1], strides = [1, 1]} : vector<6x2xf32> to vector<6x1xf32>
    %38 = vector.extract_strided_slice %0 {offsets = [1, 0], sizes = [1, 32], strides = [1, 1]} : vector<2x32xf32> to vector<1x32xf32>
    %39 = vector.broadcast %37 : vector<6x1xf32> to vector<6x32xf32>
    %40 = vector.broadcast %38 : vector<1x32xf32> to vector<6x32xf32>
    %41 = arith.mulf %39, %40 : vector<6x32xf32>
    %42 = arith.addf %36, %41 : vector<6x32xf32>
    %43 = vector.broadcast %1 : vector<1x32xf32> to vector<6x32xf32>
    %44 = arith.addf %42, %43 : vector<6x32xf32>
    %cst_17 = arith.constant 0.000000e+00 : f32
    %45 = vector.broadcast %cst_17 : f32 to vector<6x32xf32>
    %46 = arith.maximumf %44, %45 : vector<6x32xf32>
    %cst_18 = arith.constant dense<0.000000e+00> : vector<6x32xf32>
    %47 = tpu.matmul %46, %2, %cst_18 {dimension_numbers = #tpu.dot_dimension_numbers<[1], [0], [0], [1], [0, 0, 1, 1], [], []>} : vector<6x32xf32>, vector<32x32xf32>, vector<6x32xf32> -> vector<6x32xf32>
    %48 = vector.broadcast %3 : vector<1x32xf32> to vector<6x32xf32>
    %49 = arith.addf %47, %48 : vector<6x32xf32>
    %50 = arith.subf %49, %31 : vector<6x32xf32>
    %51 = arith.mulf %50, %50 : vector<6x32xf32>
    %52 = vector.shape_cast %51 : vector<6x32xf32> to vector<1x6x32xf32>
    %cst_19 = arith.constant dense<0.000000e+00> : vector<1xf32>
    %53 = vector.multi_reduction <add>, %52, %cst_19 [1, 2] : vector<1x6x32xf32> to vector<1xf32>
    %54 = vector.shape_cast %53 : vector<1xf32> to vector<1x1x1xf32>
    %55 = vector.extract %54[0, 0, 0] : f32 from vector<1x1x1xf32>
    %cst_20 = arith.constant 0.00520833349 : f32
    %56 = arith.mulf %cst_20, %55 : f32
    %cst_21 = arith.constant 9.765625E-4 : f32
    %57 = arith.mulf %cst_21, %29 : f32
    %58 = arith.addf %56, %57 : f32
    %c0_22 = arith.constant 0 : index
    %c0_23 = arith.constant 0 : index
    %59 = memref.load %arg8[%c0_22, %c0_23] : memref<1x1xf32, #tpu.memory_space<smem>>
    memref.store %58, %arg8[%c0_22, %c0_23] : memref<1x1xf32, #tpu.memory_space<smem>>
    return
  }
}

</mosaic_0001>

<llo_original>
// kernel: loss_with_autoencoder.1
$region0: #{loss_with_autoencoder.1}
  #allocation0 [shape = 'u32[]', space=smem, size = 0x4, offset = 0x4, fixed_abs, tag = 'smem constant byte address 0x4 - core index']
  #allocation1 [shape = 'u32[144,128]{1,0:T(1,128)}', space=vmem, size = 0x12000, scoped, tag = 'internal scratch']
  %s0 = inlined_call_operand.vmem [shape: f32[16,2], index: 0, kind: input, shape index: {}]
  %s1 = inlined_call_operand.vmem [shape: f32[16,32], index: 1, kind: input, shape index: {}]
  %s2 = inlined_call_operand.vmem [shape: f32[6,2], index: 2, kind: input, shape index: {}]
  %s3 = inlined_call_operand.vmem [shape: f32[6,32], index: 3, kind: input, shape index: {}]
  %s4 = inlined_call_operand.vmem [shape: f32[2,32], index: 4, kind: input, shape index: {}]
  %s5 = inlined_call_operand.vmem [shape: f32[1,32], index: 5, kind: input, shape index: {}]
  %s6 = inlined_call_operand.vmem [shape: f32[32,32], index: 6, kind: input, shape index: {}]
  %s7 = inlined_call_operand.vmem [shape: f32[1,32], index: 7, kind: input, shape index: {}]
  %s8 = inlined_call_operand.hbm [shape: f32[1,1], index: 8, kind: output, shape index: {}]
  %s9 = sld [smem:[#allocation0]]
  $region42: #{loss_with_autoencoder.1} parent=0
    _
  %s11 = ssub.s32 1, %s9
  %s12 = scalar_select 0, %s11, %s9
  $region1: #{loss_with_autoencoder.1} parent=0
    #allocation2 [shape = 'u8[512]{0}', space=smem, size = 0x200, scoped, tag = 'output window, operand 0, single buffered']
    #allocation3 [shape = 's32[1]{0}', space=sflag, size = 0x4, scoped, tag = 'scoped memory for loss_with_autoencoder.1']
    %13 = vsyncpa [#allocation3], 0
    // Predicated region
    $region2: #{loss_with_autoencoder.1} parent=1 // pred_check
      _
    $region3: #{loss_with_autoencoder.1} parent=1 // pred_check_branch
      %15 = sbr.rel (0) target = $region5
    $region4: #{loss_with_autoencoder.1} parent=1 // pred_region
      _
    $region5: #{loss_with_autoencoder.1} parent=1 // pred_fallthru
      _
    // Predicated region
    $region6: #{loss_with_autoencoder.1} parent=1 // pred_check
      _
    $region7: #{loss_with_autoencoder.1} parent=1 // pred_check_branch
      %17 = sbr.rel (0) target = $region9
    $region8: #{loss_with_autoencoder.1} parent=1 // pred_region
      _
    $region9: #{loss_with_autoencoder.1} parent=1 // pred_fallthru
      _
    // Predicated region
    $region10: #{loss_with_autoencoder.1} parent=1 // pred_check
      _
    $region11: #{loss_with_autoencoder.1} parent=1 // pred_check_branch
      %19 = sbr.rel (0) target = $region13
    $region12: #{loss_with_autoencoder.1} parent=1 // pred_region
      _
    $region13: #{loss_with_autoencoder.1} parent=1 // pred_fallthru
      _
    // Predicated region
    $region14: #{loss_with_autoencoder.1} parent=1 // pred_check
      _
    $region15: #{loss_with_autoencoder.1} parent=1 // pred_check_branch
      %21 = sbr.rel (0) target = $region17
    $region16: #{loss_with_autoencoder.1} parent=1 // pred_region
      _
    $region17: #{loss_with_autoencoder.1} parent=1 // pred_fallthru
      _
    // Predicated region
    $region18: #{loss_with_autoencoder.1} parent=1 // pred_check
      _
    $region19: #{loss_with_autoencoder.1} parent=1 // pred_check_branch
      %23 = sbr.rel (0) target = $region21
    $region20: #{loss_with_autoencoder.1} parent=1 // pred_region
      _
    $region21: #{loss_with_autoencoder.1} parent=1 // pred_fallthru
      _
    // Predicated region
    $region22: #{loss_with_autoencoder.1} parent=1 // pred_check
      _
    $region23: #{loss_with_autoencoder.1} parent=1 // pred_check_branch
      %25 = sbr.rel (0) target = $region25
    $region24: #{loss_with_autoencoder.1} parent=1 // pred_region
      _
    $region25: #{loss_with_autoencoder.1} parent=1 // pred_fallthru
      _
    // Predicated region
    $region26: #{loss_with_autoencoder.1} parent=1 // pred_check
      _
    $region27: #{loss_with_autoencoder.1} parent=1 // pred_check_branch
      %27 = sbr.rel (0) target = $region29
    $region28: #{loss_with_autoencoder.1} parent=1 // pred_region
      _
    $region29: #{loss_with_autoencoder.1} parent=1 // pred_fallthru
      _
    // Predicated region
    $region30: #{loss_with_autoencoder.1} parent=1 // pred_check
      _
    $region31: #{loss_with_autoencoder.1} parent=1 // pred_check_branch
      %29 = sbr.rel (0) target = $region33
    $region32: #{loss_with_autoencoder.1} parent=1 // pred_region
      _
    $region33: #{loss_with_autoencoder.1} parent=1 // pred_fallthru
      _
    %v30 = vld [vmem:[%s4] sm:$0x3]
    %v31 = vld [vmem:[%s5] sm:$0x1]
    %v32 = vld [vmem:[%s6] sm:$0xff]
    %v33 = vld [vmem:[%s6 + $0x8] sm:$0xff]
    %v34 = vld [vmem:[%s6 + $0x10] sm:$0xff]
    %v35 = vld [vmem:[%s6 + $0x18] sm:$0xff]
    %v36 = vld [vmem:[%s7] sm:$0x1]
    %v37 = vld [vmem:[%s0] sm:$0xff]
    %v38 = vld [vmem:[%s0 + $0x8] sm:$0xff]
    %v39 = vld [vmem:[%s1] sm:$0xff]
    %v40 = vld [vmem:[%s1 + $0x8] sm:$0xff]
    %42 = vset.pattern.permute.xlu0 0
    %43 = vperm.xlu0 %42, %v37
    %v44 = vpop.permute.xlu0 %43
    %47 = vset.pattern.permute.xlu0 0
    %48 = vperm.xlu0 %47, %v38
    %v49 = vpop.permute.xlu0 %48
    %v51 = vlaneseq
    %v52 = vshrl.u32 %v51, 7
    %v53 = vsub.s32 0, %v52
    %v54 = vrot.slane %v30, %v53
    %v55 = vmul.f32 %v44, %v54
    %v56 = vmul.f32 %v49, %v54
    %57 = vset.pattern.permute.xlu0 1
    %58 = vperm.xlu0 %57, %v37
    %v59 = vpop.permute.xlu0 %58
    %61 = vset.pattern.permute.xlu0 1
    %62 = vperm.xlu0 %61, %v38
    %v63 = vpop.permute.xlu0 %62
    %v65 = vlaneseq
    %v66 = vshrl.u32 %v65, 7
    %v67 = vsub.s32 1, %v66
    %v68 = vrot.slane %v30, %v67
    %v69 = vmul.f32 %v59, %v68
    %v70 = vmul.f32 %v63, %v68
    %v71 = vadd.f32 %v55, %v69
    %v72 = vadd.f32 %v56, %v70
    %v74 = vlaneseq
    %v75 = vshrl.u32 %v74, 7
    %v76 = vsub.s32 0, %v75
    %v77 = vrot.slane %v31, %v76
    %v79 = vadd.f32 %v71, %v77
    %v80 = vadd.f32 %v72, %v77
    %v81 = vmax.f32 %v79, 0.0
    %v82 = vmax.f32 %v80, 0.0
    %v84 = vlaneseq
    %v85 = vshrl.u32 %v84, 7
    %v86 = vsub.s32 0, %v85
    %v87 = vrot.slane %v36, %v86
    %vm89 = vcmask 261120
    %v91 = vsel %vm89, %v81, 0
    %v94 = vsel %vm89, %v82, 0
    %96 = vmatprep.subr.mxu0 0.0
    %97 = vmatpush1.msra.mxu0 %v32
    %98 = vmatprep.subr.mxu0 0.0
    %99 = vmatpush1.msra.mxu0 %v33
    %100 = vmatprep.subr.mxu0 0.0
    %101 = vmatpush1.msra.mxu0 %v34
    %102 = vmatprep.subr.mxu0 0.0
    %103 = vmatpush1.msra.mxu0 %v35
    %104 = vmatprep.subr.mxu0 0.0
    %105 = vmatpush1.msra.mxu0 0.0
    %106 = vmatprep.subr.mxu0 0.0
    %107 = vmatpush1.msra.mxu0 0.0
    %108 = vmatprep.subr.mxu0 0.0
    %109 = vmatpush1.msra.mxu0 0.0
    %110 = vmatprep.subr.mxu0 0.0
    %111 = vmatpush1.msra.mxu0 0.0
    %112 = vmatprep.subr.mxu0 0.0
    %113 = vmatpush1.msra.mxu0 0.0
    %114 = vmatprep.subr.mxu0 0.0
    %115 = vmatpush1.msra.mxu0 0.0
    %116 = vmatprep.subr.mxu0 0.0
    %117 = vmatpush1.msra.mxu0 0.0
    %118 = vmatprep.subr.mxu0 0.0
    %119 = vmatpush1.msra.mxu0 0.0
    %120 = vmatprep.subr.mxu0 0.0
    %121 = vmatpush1.msra.mxu0 0.0
    %122 = vmatprep.subr.mxu0 0.0
    %123 = vmatpush1.msra.mxu0 0.0
    %124 = vmatprep.subr.mxu0 0.0
    %125 = vmatpush1.msra.mxu0 0.0
    %126 = vmatprep.subr.mxu0 0.0
    %127 = vmatpush1.msra.mxu0 0.0
    %128 = vmatprep.subr.mxu0 0.0
    %129 = vmatpush1.msra.mxu0 0.0
    %130 = vmatprep.subr.mxu0 0.0
    %131 = vmatpush1.msra.mxu0 0.0
    %132 = vmatprep.subr.mxu0 0.0
    %133 = vmatpush1.msra.mxu0 0.0
    %134 = vmatprep.subr.mxu0 0.0
    %135 = vmatpush1.msra.mxu0 0.0
    %136 = vmatprep.subr.mxu0 0.0
    %137 = vmatpush1.msra.mxu0 0.0
    %138 = vmatprep.subr.mxu0 0.0
    %139 = vmatpush1.msra.mxu0 0.0
    %140 = vmatprep.subr.mxu0 0.0
    %141 = vmatpush1.msra.mxu0 0.0
    %142 = vmatprep.subr.mxu0 0.0
    %143 = vmatpush1.msra.mxu0 0.0
    %144 = vmatprep.subr.mxu0 0.0
    %145 = vmatpush1.msra.mxu0 0.0
    %146 = vmatprep.subr.mxu0 0.0
    %147 = vmatpush1.msra.mxu0 0.0
    %148 = vmatprep.subr.mxu0 0.0
    %149 = vmatpush1.msra.mxu0 0.0
    %150 = vmatprep.subr.mxu0 0.0
    %151 = vmatpush1.msra.mxu0 0.0
    %152 = vmatprep.subr.mxu0 0.0
    %153 = vmatpush1.msra.mxu0 0.0
    %154 = vmatprep.subr.mxu0 0.0
    %155 = vmatpush1.msra.mxu0 0.0
    %156 = vmatprep.subr.mxu0 0.0
    %157 = vmatpush1.msra.mxu0 0.0
    %158 = vmatprep.subr.mxu0 0.0
    %159 = vmatpush1.msra.mxu0 0.0
    %160 = vmatprep.mubr.f32.mxu0 0.0
    %161 = vmatmul.mubr.f32.gmra.mrb[0].mxu0 %v91
    %v162 = vpop.f32.mrb[0].mxu0
    %v163 = vadd.f32 %v87, %v162
    %v164 = vpop.f32.mrb[0].mxu0
    %165 = vmatprep.mubr.f32.mxu0 0.0
    %166 = vmatmul.mubr.f32.gmra.mrb[0].mxu0 %v94
    %v167 = vpop.f32.mrb[0].mxu0
    %v168 = vadd.f32 %v87, %v167
    %v169 = vpop.f32.mrb[0].mxu0
    %170 = vdwg.mxu0
    %v171 = vsub.f32 %v163, %v39
    %v172 = vsub.f32 %v168, %v40
    %v173 = vmul.f32 %v171, %v171
    %v174 = vmul.f32 %v172, %v172
    %v175 = vsel %vm89, %v173, 0.0
    %v176 = vsel %vm89, %v174, 0.0
    %v177 = vadd.f32 %v175, %v176
    %178 = vadd.xlane.f32.xlu0 %v177
    %v179 = vpop.xlane.xlu0 %178
    %v180 = vrot.slane %v179, 4
    %v181 = vadd.f32 %v179, %v180
    %v182 = vrot.slane %v181, 2
    %v183 = vadd.f32 %v181, %v182
    %v184 = vrot.slane %v183, 1
    %v185 = vadd.f32 %v183, %v184
    %s186 = vtos %v185
    %v187 = vld [vmem:[%s2] sm:$0x3f]
    %v188 = vld [vmem:[%s3] sm:$0x3f]
    %190 = vset.pattern.permute.xlu0 0
    %191 = vperm.xlu0 %190, %v187
    %v192 = vpop.permute.xlu0 %191
    %v194 = vmul.f32 %v192, %v54
    %195 = vset.pattern.permute.xlu0 1
    %196 = vperm.xlu0 %195, %v187
    %v197 = vpop.permute.xlu0 %196
    %v199 = vmul.f32 %v197, %v68
    %v200 = vadd.f32 %v194, %v199
    %v201 = vadd.f32 %v200, %v77
    %v202 = vmax.f32 %v201, 0.0
    %v204 = vsel %vm89, %v202, 0
    %206 = vmatprep.subr.mxu0 0.0
    %207 = vmatpush1.msra.mxu0 %v32
    %208 = vmatprep.subr.mxu0 0.0
    %209 = vmatpush1.msra.mxu0 %v33
    %210 = vmatprep.subr.mxu0 0.0
    %211 = vmatpush1.msra.mxu0 %v34
    %212 = vmatprep.subr.mxu0 0.0
    %213 = vmatpush1.msra.mxu0 %v35
    %214 = vmatprep.subr.mxu0 0.0
    %215 = vmatpush1.msra.mxu0 0.0
    %216 = vmatprep.subr.mxu0 0.0
    %217 = vmatpush1.msra.mxu0 0.0
    %218 = vmatprep.subr.mxu0 0.0
    %219 = vmatpush1.msra.mxu0 0.0
    %220 = vmatprep.subr.mxu0 0.0
    %221 = vmatpush1.msra.mxu0 0.0
    %222 = vmatprep.subr.mxu0 0.0
    %223 = vmatpush1.msra.mxu0 0.0
    %224 = vmatprep.subr.mxu0 0.0
    %225 = vmatpush1.msra.mxu0 0.0
    %226 = vmatprep.subr.mxu0 0.0
    %227 = vmatpush1.msra.mxu0 0.0
    %228 = vmatprep.subr.mxu0 0.0
    %229 = vmatpush1.msra.mxu0 0.0
    %230 = vmatprep.subr.mxu0 0.0
    %231 = vmatpush1.msra.mxu0 0.0
    %232 = vmatprep.subr.mxu0 0.0
    %233 = vmatpush1.msra.mxu0 0.0
    %234 = vmatprep.subr.mxu0 0.0
    %235 = vmatpush1.msra.mxu0 0.0
    %236 = vmatprep.subr.mxu0 0.0
    %237 = vmatpush1.msra.mxu0 0.0
    %238 = vmatprep.subr.mxu0 0.0
    %239 = vmatpush1.msra.mxu0 0.0
    %240 = vmatprep.subr.mxu0 0.0
    %241 = vmatpush1.msra.mxu0 0.0
    %242 = vmatprep.subr.mxu0 0.0
    %243 = vmatpush1.msra.mxu0 0.0
    %244 = vmatprep.subr.mxu0 0.0
    %245 = vmatpush1.msra.mxu0 0.0
    %246 = vmatprep.subr.mxu0 0.0
    %247 = vmatpush1.msra.mxu0 0.0
    %248 = vmatprep.subr.mxu0 0.0
    %249 = vmatpush1.msra.mxu0 0.0
    %250 = vmatprep.subr.mxu0 0.0
    %251 = vmatpush1.msra.mxu0 0.0
    %252 = vmatprep.subr.mxu0 0.0
    %253 = vmatpush1.msra.mxu0 0.0
    %254 = vmatprep.subr.mxu0 0.0
    %255 = vmatpush1.msra.mxu0 0.0
    %256 = vmatprep.subr.mxu0 0.0
    %257 = vmatpush1.msra.mxu0 0.0
    %258 = vmatprep.subr.mxu0 0.0
    %259 = vmatpush1.msra.mxu0 0.0
    %260 = vmatprep.subr.mxu0 0.0
    %261 = vmatpush1.msra.mxu0 0.0
    %262 = vmatprep.subr.mxu0 0.0
    %263 = vmatpush1.msra.mxu0 0.0
    %264 = vmatprep.subr.mxu0 0.0
    %265 = vmatpush1.msra.mxu0 0.0
    %266 = vmatprep.subr.mxu0 0.0
    %267 = vmatpush1.msra.mxu0 0.0
    %268 = vmatprep.subr.mxu0 0.0
    %269 = vmatpush1.msra.mxu0 0.0
    %270 = vmatprep.mubr.f32.mxu0 0.0
    %271 = vmatmul.mubr.f32.gmra.mrb[0].mxu0 %v204
    %v272 = vpop.f32.mrb[0].mxu0
    %v273 = vadd.f32 %v87, %v272
    %v274 = vpop.f32.mrb[0].mxu0
    %275 = vdwg.mxu0
    %v276 = vsub.f32 %v273, %v188
    %v277 = vmul.f32 %v276, %v276
    %vm278 = vcmask 259072
    %v279 = vsel %vm278, %v277, 0.0
    %280 = vadd.xlane.f32.xlu0 %v279
    %v281 = vpop.xlane.xlu0 %280
    %v282 = vrot.slane %v281, 4
    %v283 = vadd.f32 %v281, %v282
    %v284 = vrot.slane %v283, 2
    %v285 = vadd.f32 %v283, %v284
    %v286 = vrot.slane %v285, 1
    %v287 = vadd.f32 %v285, %v286
    %s288 = vtos %v287
    %s289 = smul.f32 %s288, 0.0052083335
    %s290 = smul.f32 %s186, 0.0009765625
    %s291 = sadd.f32 %s289, %s290
    %s292 = scalar_lea.smem [#allocation2], 0
    %293 = sst [smem:[%s292]] %s291
    // Predicated region
    $region34: #{loss_with_autoencoder.1} parent=1 // pred_check
      _
    $region35: #{loss_with_autoencoder.1} parent=1 // pred_check_branch
      %295 = sbr.rel (0) target = $region37
    $region36: #{loss_with_autoencoder.1} parent=1 // pred_region
      %s297 = ssub.s32 16, 16
      %298 = vsyncadd [#allocation3], %s297
      %301 = dma.smem_to_hbm [#allocation2], 16, %s8, [#allocation3]
    $region37: #{loss_with_autoencoder.1} parent=1 // pred_fallthru
      _
    // Predicated region
    $region38: #{loss_with_autoencoder.1} parent=1 // pred_check
      _
    $region39: #{loss_with_autoencoder.1} parent=1 // pred_check_branch
      %303 = sbr.rel (0) target = $region41
    $region40: #{loss_with_autoencoder.1} parent=1 // pred_region
      %304 = dma.done [#allocation3], 16
    $region41: #{loss_with_autoencoder.1} parent=1 // pred_fallthru
      _
    %305 = sfence
    %306 = vsyncpa [#allocation3], 1

</llo_original>
